<compile_context>
chip_gen: v7x
topology: tpu7x:2x2x1
jax: 0.10.0
libtpu: 0.0.40
codegen_flags: <defaults>
</compile_context>

<pallas_src>
import jax
import jax.numpy as jnp
from jax.experimental import pallas as pl
from jax.experimental.pallas import tpu as pltpu


# ---------------------------------------------------------------------------
# Kernel: one fused affine layer, y = x @ W + b
# ---------------------------------------------------------------------------
def fused_linear_kernel(x_ref, w_ref, b_ref, o_ref):
    acc = jnp.dot(x_ref[...], w_ref[...], preferred_element_type=jnp.float32)
    o_ref[...] = (acc + b_ref[...]).astype(o_ref.dtype)


# ---------------------------------------------------------------------------
# Tiling heuristics
# ---------------------------------------------------------------------------
_TILE_BYTES = 4 << 20      # target activation-tile size per buffer (~4 MiB)
_MIN_SPLIT_ROWS = 1024     # below this many rows a single grid step is cheapest


def _round_up(v, m):
    return ((v + m - 1) // m) * m


def _choose_row_tile(rows, row_bytes):
    """Pick a row-tile that is big (hides per-step overhead) and gives an even
    number of grid steps for mid/large batches (v7x megacore balance)."""
    max_rows = max(8, (_TILE_BYTES // row_bytes) // 8 * 8)
    if rows <= max_rows:
        if rows >= 2 * _MIN_SPLIT_ROWS:
            # Split into exactly 2 steps so both v7x TensorCores get work.
            return _round_up(pl.cdiv(rows, 2), 8)
        return rows                     # single step; block == full array dim
    steps = pl.cdiv(rows, max_rows)
    if steps % 2:
        steps += 1                      # even step count -> balanced over 2 TCs
    return _round_up(pl.cdiv(rows, steps), 8)


def _fused_affine(x, w, b):
    """One pallas_call computing x @ w + b with batch tiling over rows."""
    rows, k = x.shape
    d = w.shape[1]
    itemsize = jnp.dtype(x.dtype).itemsize
    tile = _choose_row_tile(rows, max(k, d) * itemsize)
    grid = (pl.cdiv(rows, tile),)       # Pallas clips the final partial block

    return pl.pallas_call(
        fused_linear_kernel,
        out_shape=jax.ShapeDtypeStruct((rows, d), x.dtype),
        grid=grid,
        in_specs=[
            # Batch-tiled activations.
            pl.BlockSpec((tile, k), lambda i: (i, 0)),
            # Folded weight / bias: constant index map -> VMEM-resident.
            pl.BlockSpec(w.shape, lambda i: (0, 0)),
            pl.BlockSpec(b.shape, lambda i: (0, 0)),
        ],
        out_specs=pl.BlockSpec((tile, d), lambda i: (i, 0)),
        compiler_params=pltpu.CompilerParams(
            dimension_semantics=("parallel",),   # v7x: shard batch over 2 TCs
            vmem_limit_bytes=32 << 20,           # room for 4x ~4 MiB act buffers
        ),
        cost_estimate=pl.CostEstimate(
            flops=2 * rows * k * d,
            transcendentals=0,
            bytes_accessed=(rows * k + rows * d + k * d + d) * itemsize,
        ),
    )(x, w, b)


# ---------------------------------------------------------------------------
# Fold + forward construction
# ---------------------------------------------------------------------------
def fold_linear_params(params):
    """Exact fold of a chain of affine layers into a single (W_eff, b_eff).

    Valid only because there are no nonlinearities between layers.
    """
    w_eff, b_eff = params[0]
    for w_i, b_i in params[1:]:
        w_eff = jnp.dot(w_eff, w_i, preferred_element_type=jnp.float32)
        b_eff = jnp.dot(b_eff, w_i, preferred_element_type=jnp.float32) + b_i
    return w_eff, b_eff


def make_forward(params):
    """Fold the affine chain once (outside the hot path) and return a jitted
    forward(x) closure.  Also precomputes the lane-packed weight/bias."""
    w_eff, b_eff = fold_linear_params(params)
    d_in, d_out = w_eff.shape

    # Lane-dense packing factor: pack `pack` independent batch rows per lane
    # row so vregs use all 128 lanes instead of d (=32) of them.
    pack = 1
    if d_in < 128 and d_out < 128 and 128 % d_in == 0 and 128 % d_out == 0:
        pack = min(128 // d_in, 128 // d_out)

    if pack > 1:
        eye = jnp.eye(pack, dtype=w_eff.dtype)
        w_pack = jnp.kron(eye, w_eff)          # block-diag (pack*d_in, pack*d_out)
        b_pack = jnp.tile(b_eff, (1, pack))    # (1, pack*d_out)
    else:
        w_pack, b_pack = w_eff, b_eff

    def forward(x):
        n = x.shape[0]
        use_pack = pack > 1 and (n % pack == 0)
        if use_pack:
            # Contiguous reshape (bitcast view, no copy): rows 4i..4i+3 of x
            # land in lane blocks 0..3 of packed row i.
            x_run, w, b = x.reshape(n // pack, pack * d_in), w_pack, b_pack
        else:
            x_run, w, b = x, w_eff, b_eff
        out = _fused_affine(x_run, w, b)
        return out.reshape(n, d_out) if use_pack else out

    return jax.jit(forward)


# ---------------------------------------------------------------------------
# Parameter construction + pure-JAX reference
# ---------------------------------------------------------------------------
def make_params(key, dims):
    """Deterministic nn.Linear-style init for each layer in the chain."""
    params = []
    for d_in, d_out in zip(dims[:-1], dims[1:]):
        key, kw, kb = jax.random.split(key, 3)
        bound = 1.0 / (d_in ** 0.5)
        # Stored as (d_in, d_out) so each layer is x @ W + b (== nn.Linear x @ W.T + b).
        w = jax.random.uniform(kw, (d_in, d_out), jnp.float32, -bound, bound)
        b = jax.random.uniform(kb, (1, d_out), jnp.float32, -bound, bound)
        params.append((w, b))
    return params


def reference(x, params):
    """Plain-JAX reference of the sequential (unfused) forward pass."""
    h = x
    for w, b in params:
        h = h @ w + b
    return h


if __name__ == "__main__":
    key = jax.random.PRNGKey(0)
    kx, kx2, kp = jax.random.split(key, 3)

    dims = (32, 64, 48, 32)
    params = make_params(kp, dims)
    forward = make_forward(params)

    # Primary small test (batch divisible by 4 -> lane-packed path).
    batch = 8
    x = jax.random.normal(kx, (batch, dims[0]), jnp.float32)
    out = jax.block_until_ready(forward(x))
    ref = reference(x, params)
    assert out.shape == (batch, dims[-1])
    assert jnp.allclose(out, ref, atol=1e-4, rtol=1e-4)

    # Secondary check: batch not divisible by 4 -> unpacked fallback path.
    batch2 = 10
    x2 = jax.random.normal(kx2, (batch2, dims[0]), jnp.float32)
    out2 = jax.block_until_ready(forward(x2))
    ref2 = reference(x2, params)
    assert out2.shape == (batch2, dims[-1])
    assert jnp.allclose(out2, ref2, atol=1e-4, rtol=1e-4)

    print("KERNEL_OK")
</pallas_src>

<mosaic_0001>
module attributes {stable_mosaic.version = 11 : i64} {
  func.func @fused_linear_kernel(%arg0: i32, %arg1: memref<2x128xf32, #tpu.memory_space<vmem>>, %arg2: memref<128x128xf32, #tpu.memory_space<vmem>>, %arg3: memref<1x128xf32, #tpu.memory_space<vmem>>, %arg4: memref<2x128xf32, #tpu.memory_space<vmem>>) attributes {dimension_semantics = [#tpu.dimension_semantics<parallel>], iteration_bounds = array<i64: 1>, scalar_prefetch = 0 : i64, scratch_operands = 0 : i64, tpu.core_type = #tpu.core_type<tc>, window_params = [{transform_indices = @transform_0, window_bounds = array<i64: 2, 128>}, {pipeline_mode = #tpu.pipeline_mode<synchronous>, transform_indices = @transform_1, window_bounds = array<i64: 128, 128>}, {pipeline_mode = #tpu.pipeline_mode<synchronous>, transform_indices = @transform_2, window_bounds = array<i64: 1, 128>}, {transform_indices = @transform_3, window_bounds = array<i64: 2, 128>}]} {
    %c0 = arith.constant 0 : index
    %c0_0 = arith.constant 0 : index
    %0 = vector.load %arg1[%c0, %c0_0] : memref<2x128xf32, #tpu.memory_space<vmem>>, vector<2x128xf32>
    %c0_1 = arith.constant 0 : index
    %c0_2 = arith.constant 0 : index
    %1 = vector.load %arg2[%c0_1, %c0_2] : memref<128x128xf32, #tpu.memory_space<vmem>>, vector<128x128xf32>
    %cst = arith.constant dense<0.000000e+00> : vector<2x128xf32>
    %2 = tpu.matmul %0, %1, %cst {dimension_numbers = #tpu.dot_dimension_numbers<[1], [0], [0], [1], [0, 0, 1, 1], [], []>} : vector<2x128xf32>, vector<128x128xf32>, vector<2x128xf32> -> vector<2x128xf32>
    %c0_3 = arith.constant 0 : index
    %c0_4 = arith.constant 0 : index
    %3 = vector.load %arg3[%c0_3, %c0_4] : memref<1x128xf32, #tpu.memory_space<vmem>>, vector<1x128xf32>
    %4 = vector.broadcast %3 : vector<1x128xf32> to vector<2x128xf32>
    %5 = arith.addf %2, %4 : vector<2x128xf32>
    %c0_5 = arith.constant 0 : index
    %c0_6 = arith.constant 0 : index
    %6 = vector.load %arg4[%c0_5, %c0_6] : memref<2x128xf32, #tpu.memory_space<vmem>>, vector<2x128xf32>
    tpu.vector_store %arg4[%c0_5, %c0_6], %5 {strides = array<i32>} : memref<2x128xf32, #tpu.memory_space<vmem>>, vector<2x128xf32>,
    return
  }
  func.func @transform_0(%arg0: i32) -> (i32, i32) {
    %c0_i32 = arith.constant 0 : i32
    %c0_i32_0 = arith.constant 0 : i32
    return %arg0, %c0_i32 : i32, i32
  }
  func.func @transform_1(%arg0: i32) -> (i32, i32) {
    %c0_i32 = arith.constant 0 : i32
    %c0_i32_0 = arith.constant 0 : i32
    %c0_i32_1 = arith.constant 0 : i32
    return %c0_i32, %c0_i32_0 : i32, i32
  }
  func.func @transform_2(%arg0: i32) -> (i32, i32) {
    %c0_i32 = arith.constant 0 : i32
    %c0_i32_0 = arith.constant 0 : i32
    %c0_i32_1 = arith.constant 0 : i32
    return %c0_i32, %c0_i32_0 : i32, i32
  }
  func.func @transform_3(%arg0: i32) -> (i32, i32) {
    %c0_i32 = arith.constant 0 : i32
    %c0_i32_0 = arith.constant 0 : i32
    return %arg0, %c0_i32 : i32, i32
  }
}

</mosaic_0001>

<llo_original>
// kernel: forward.1
$region0: #{forward.1}
  #allocation0 [shape = 'u32[]', space=smem, size = 0x4, offset = 0x4, fixed_abs, tag = 'smem constant byte address 0x4 - core index']
  #allocation1 [shape = 'u32[144,128]{1,0:T(1,128)}', space=vmem, size = 0x12000, scoped, tag = 'internal scratch']
  %s0 = inlined_call_operand.vmem [shape: f32[2,128], index: 0, kind: input, shape index: {}]
  %s1 = inlined_call_operand.hbm [shape: f32[128,128], index: 1, kind: input, shape index: {}]
  %s2 = inlined_call_operand.vmem [shape: f32[1,128], index: 2, kind: input, shape index: {}]
  %s3 = inlined_call_operand.vmem [shape: f32[2,128], index: 3, kind: output, shape index: {}]
  %s4 = sld [smem:[#allocation0]]
  $region26: #{forward.1} parent=0
    _
  %s6 = ssub.s32 1, %s4
  %s7 = scalar_select 0, %s6, %s4
  $region1: #{forward.1} parent=0
    #allocation2 [shape = 'u8[65536]{0}', space=vmem, size = 0x10000, scoped, tag = 'input window, operand 1, single buffered']
    #allocation3 [shape = 's32[1]{0}', space=sflag, size = 0x4, scoped, tag = 'scoped memory for forward.1']
    %8 = vsyncpa [#allocation3], 0
    // Predicated region
    $region2: #{forward.1} parent=1 // pred_check
      _
    $region3: #{forward.1} parent=1 // pred_check_branch
      %10 = sbr.rel (0) target = $region5
    $region4: #{forward.1} parent=1 // pred_region
      _
    $region5: #{forward.1} parent=1 // pred_fallthru
      _
    // Predicated region
    $region6: #{forward.1} parent=1 // pred_check
      _
    $region7: #{forward.1} parent=1 // pred_check_branch
      %12 = sbr.rel (0) target = $region9
    $region8: #{forward.1} parent=1 // pred_region
      %s14 = ssub.s32 2048, 2048
      %15 = vsyncadd [#allocation3], %s14
      %s16 = sshll.u32 [#allocation2], 4
      %s17 = int_to_ptr.vmem [resolvable:$true] %s16
      %22 = dma.hbm_to_vmem [thread:$0]  %s1, 2048, %s17, [#allocation3], 128, 128, 8
    $region9: #{forward.1} parent=1 // pred_fallthru
      _
    // Predicated region
    $region10: #{forward.1} parent=1 // pred_check
      _
    $region11: #{forward.1} parent=1 // pred_check_branch
      %24 = sbr.rel (0) target = $region13
    $region12: #{forward.1} parent=1 // pred_region
      _
    $region13: #{forward.1} parent=1 // pred_fallthru
      _
    // Predicated region
    $region14: #{forward.1} parent=1 // pred_check
      _
    $region15: #{forward.1} parent=1 // pred_check_branch
      %26 = sbr.rel (0) target = $region17
    $region16: #{forward.1} parent=1 // pred_region
      %27 = dma.done [#allocation3], 2048
    $region17: #{forward.1} parent=1 // pred_fallthru
      _
    %v28 = vld [vmem:[%s0] sm:$0x3]
    %v29 = vld [vmem:[#allocation2] sm:$0xff]
    %v30 = vld [vmem:[#allocation2 + $0x8] sm:$0xff]
    %v31 = vld [vmem:[#allocation2 + $0x10] sm:$0xff]
    %v32 = vld [vmem:[#allocation2 + $0x18] sm:$0xff]
    %v33 = vld [vmem:[#allocation2 + $0x20] sm:$0xff]
    %v34 = vld [vmem:[#allocation2 + $0x28] sm:$0xff]
    %v35 = vld [vmem:[#allocation2 + $0x30] sm:$0xff]
    %v36 = vld [vmem:[#allocation2 + $0x38] sm:$0xff]
    %v37 = vld [vmem:[#allocation2 + $0x40] sm:$0xff]
    %v38 = vld [vmem:[#allocation2 + $0x48] sm:$0xff]
    %v39 = vld [vmem:[#allocation2 + $0x50] sm:$0xff]
    %v40 = vld [vmem:[#allocation2 + $0x58] sm:$0xff]
    %v41 = vld [vmem:[#allocation2 + $0x60] sm:$0xff]
    %v42 = vld [vmem:[#allocation2 + $0x68] sm:$0xff]
    %v43 = vld [vmem:[#allocation2 + $0x70] sm:$0xff]
    %v44 = vld [vmem:[#allocation2 + $0x78] sm:$0xff]
    %v45 = vld [vmem:[%s2] sm:$0x1]
    %v47 = vlaneseq
    %v48 = vshrl.u32 %v47, 7
    %v49 = vsub.s32 0, %v48
    %v50 = vrot.slane %v45, %v49
    %52 = vmatprep.subr.mxu0 0.0
    %53 = vmatpush1.msra.mxu0 %v29
    %54 = vmatprep.subr.mxu0 0.0
    %55 = vmatpush1.msra.mxu0 %v30
    %56 = vmatprep.subr.mxu0 0.0
    %57 = vmatpush1.msra.mxu0 %v31
    %58 = vmatprep.subr.mxu0 0.0
    %59 = vmatpush1.msra.mxu0 %v32
    %60 = vmatprep.subr.mxu0 0.0
    %61 = vmatpush1.msra.mxu0 %v33
    %62 = vmatprep.subr.mxu0 0.0
    %63 = vmatpush1.msra.mxu0 %v34
    %64 = vmatprep.subr.mxu0 0.0
    %65 = vmatpush1.msra.mxu0 %v35
    %66 = vmatprep.subr.mxu0 0.0
    %67 = vmatpush1.msra.mxu0 %v36
    %68 = vmatprep.subr.mxu0 0.0
    %69 = vmatpush1.msra.mxu0 %v37
    %70 = vmatprep.subr.mxu0 0.0
    %71 = vmatpush1.msra.mxu0 %v38
    %72 = vmatprep.subr.mxu0 0.0
    %73 = vmatpush1.msra.mxu0 %v39
    %74 = vmatprep.subr.mxu0 0.0
    %75 = vmatpush1.msra.mxu0 %v40
    %76 = vmatprep.subr.mxu0 0.0
    %77 = vmatpush1.msra.mxu0 %v41
    %78 = vmatprep.subr.mxu0 0.0
    %79 = vmatpush1.msra.mxu0 %v42
    %80 = vmatprep.subr.mxu0 0.0
    %81 = vmatpush1.msra.mxu0 %v43
    %82 = vmatprep.subr.mxu0 0.0
    %83 = vmatpush1.msra.mxu0 %v44
    %84 = vmatprep.subr.mxu0 0.0
    %85 = vmatpush1.msra.mxu0 0.0
    %86 = vmatprep.subr.mxu0 0.0
    %87 = vmatpush1.msra.mxu0 0.0
    %88 = vmatprep.subr.mxu0 0.0
    %89 = vmatpush1.msra.mxu0 0.0
    %90 = vmatprep.subr.mxu0 0.0
    %91 = vmatpush1.msra.mxu0 0.0
    %92 = vmatprep.subr.mxu0 0.0
    %93 = vmatpush1.msra.mxu0 0.0
    %94 = vmatprep.subr.mxu0 0.0
    %95 = vmatpush1.msra.mxu0 0.0
    %96 = vmatprep.subr.mxu0 0.0
    %97 = vmatpush1.msra.mxu0 0.0
    %98 = vmatprep.subr.mxu0 0.0
    %99 = vmatpush1.msra.mxu0 0.0
    %100 = vmatprep.subr.mxu0 0.0
    %101 = vmatpush1.msra.mxu0 0.0
    %102 = vmatprep.subr.mxu0 0.0
    %103 = vmatpush1.msra.mxu0 0.0
    %104 = vmatprep.subr.mxu0 0.0
    %105 = vmatpush1.msra.mxu0 0.0
    %106 = vmatprep.subr.mxu0 0.0
    %107 = vmatpush1.msra.mxu0 0.0
    %108 = vmatprep.subr.mxu0 0.0
    %109 = vmatpush1.msra.mxu0 0.0
    %110 = vmatprep.subr.mxu0 0.0
    %111 = vmatpush1.msra.mxu0 0.0
    %112 = vmatprep.subr.mxu0 0.0
    %113 = vmatpush1.msra.mxu0 0.0
    %114 = vmatprep.subr.mxu0 0.0
    %115 = vmatpush1.msra.mxu0 0.0
    %116 = vmatprep.mubr.f32.mxu0 0.0
    %117 = vmatmul.mubr.f32.gmra.mrb[0].mxu0 %v28
    %v118 = vpop.f32.mrb[0].mxu0
    %v119 = vadd.f32 %v50, %v118
    %v120 = vpop.f32.mrb[0].mxu0
    %121 = vdwg.mxu0
    %122 = vst [vmem:[%s3] sm:$0x3] %v119
    // Predicated region
    $region18: #{forward.1} parent=1 // pred_check
      _
    $region19: #{forward.1} parent=1 // pred_check_branch
      %124 = sbr.rel (0) target = $region21
    $region20: #{forward.1} parent=1 // pred_region
      _
    $region21: #{forward.1} parent=1 // pred_fallthru
      _
    // Predicated region
    $region22: #{forward.1} parent=1 // pred_check
      _
    $region23: #{forward.1} parent=1 // pred_check_branch
      %126 = sbr.rel (0) target = $region25
    $region24: #{forward.1} parent=1 // pred_region
      _
    $region25: #{forward.1} parent=1 // pred_fallthru
      _
    %127 = vsyncpa [#allocation3], 1

</llo_original>
